<compile_context>
chip_gen: v7x
topology: tpu7x:2x2x1
jax: 0.10.0
libtpu: 0.0.40
codegen_flags: <defaults>
</compile_context>

<pallas_src>
import functools

import jax
import jax.numpy as jnp
from jax.experimental import pallas as pl
from jax.experimental.pallas import tpu as pltpu

_LANE = 128
_SUBLANE = 8


def _cdiv(a, b):
    return -(-a // b)


def _masked_frame_mse_kernel(last_ref, full_ref, nf_ref, pred_ref, true_ref,
                             out_ref, acc_ref, *, feat_dim):
    """Grid = (batch_blocks, frame_tiles); frame_tiles (last axis) is the reduction.

    last_ref  : SMEM int32 (batch_blocks,)  last frame tile any row in the block needs
    full_ref  : SMEM int32 (batch_blocks,)  # of tiles fully valid for every row
    nf_ref    : VMEM int32 (bB, 1, 1)       valid frame count per batch row
    pred_ref  : VMEM (bB, tR, 128)          lane-dense flattened (frame, feature) data
    true_ref  : VMEM (bB, tR, 128)
    out_ref   : VMEM f32 (bB, 1, 1)         per-batch loss (written on last tile)
    acc_ref   : VMEM f32 (bB, 1, 128)       lane-wise partial sums (resident scratch)
    """
    i = pl.program_id(0)
    j = pl.program_id(1)
    n_tiles = pl.num_programs(1)
    tile_rows = pred_ref.shape[1]

    @pl.when(j == 0)
    def _init():
        acc_ref[...] = jnp.zeros_like(acc_ref)

    last_tile = last_ref[i]
    full_tiles = full_ref[i]

    def _diff():
        return pred_ref[...].astype(jnp.float32) - true_ref[...].astype(jnp.float32)

    # Fast path: every element of this tile is valid for every row in the block
    # -> no iota/compare/select.  (j < full_tiles implies j <= last_tile.)
    @pl.when(j < full_tiles)
    def _accum_full():
        d = _diff()
        acc_ref[...] += jnp.sum(d * d, axis=1, keepdims=True)

    # Boundary tiles: prefix mask over the flattened (frame, feature) index.
    # Element (r, l) of tile j has flat index (j*tile_rows + r)*128 + l and is
    # valid iff < n_frames*feat_dim.  This also zeroes any garbage read from
    # the ragged (unpadded) frame-tile tail.  Tiles past last_tile are skipped
    # entirely (their block index was clamped in the index_map, so the pipeline
    # re-uses the previous block and the DMA is elided).
    @pl.when(jnp.logical_and(j >= full_tiles, j <= last_tile))
    def _accum_masked():
        d = _diff()
        limit = nf_ref[...] * feat_dim                              # (bB,1,1)
        row_ids = jax.lax.broadcasted_iota(jnp.int32, (1, tile_rows, 1), 1)
        row_start = (row_ids + j * tile_rows) * _LANE               # (1,tR,1)
        lane_ids = jax.lax.broadcasted_iota(jnp.int32, (1, 1, _LANE), 2)
        masked = jnp.where(lane_ids < limit - row_start, d, 0.0)
        acc_ref[...] += jnp.sum(masked * masked, axis=1, keepdims=True)

    @pl.when(j == n_tiles - 1)
    def _finalize():
        # Mean over the valid slice: sum / (n_frames * feat_dim).
        # (n_frames == 0 yields NaN, matching torch MSELoss on an empty slice.)
        denom = (nf_ref[...] * feat_dim).astype(jnp.float32)
        out_ref[...] = jnp.sum(acc_ref[...], axis=2, keepdims=True) / denom


def masked_frame_loss(pred, true, n_frames, *, target_bytes=4 * 1024 * 1024,
                      max_batch_fold=128):
    """pred, true: [B, T, D] (f32 or bf16); n_frames: int [B]. Returns f32 scalar."""
    B, T, D = pred.shape
    F = T * D
    if F >= 2 ** 31:
        raise ValueError("T*D must fit in int32 for the flat-index prefix mask")

    # PyTorch's pred[i, :f] slicing clamps to T frames; mirror that for the mask
    # and the per-row denominator.
    n_frames = jnp.minimum(jnp.asarray(n_frames).astype(jnp.int32), T)

    rows = _cdiv(F, _LANE)
    f_pad = rows * _LANE

    # Size tiles by bytes so bf16 gets 2x larger tiles than f32: ~4 MiB per
    # input per buffer -> 2 inputs x 2 pipeline buffers = 16 MiB.
    itemsize = jnp.dtype(pred.dtype).itemsize
    target_elems = max(_SUBLANE * _LANE, target_bytes // itemsize)

    if B > 1 and rows * _LANE <= target_elems:
        # Tiny per-row payload: fold batch rows into one block to amortize the
        # ~0.35us per-grid-step overhead, but keep >= 2 blocks on the 'parallel'
        # batch axis so v7x's two TensorCores both get work.
        b_blk = max(1, min(B, max_batch_fold, target_elems // (rows * _LANE)))
        b_blk = min(b_blk, _cdiv(B, 2))
        tile_rows = rows
    else:
        b_blk = 1
        cap_rows = max(_SUBLANE, (target_elems // _LANE) // _SUBLANE * _SUBLANE)
        tile_rows = rows if rows <= cap_rows else cap_rows

    n_tiles = _cdiv(rows, tile_rows)
    n_bblk = _cdiv(B, b_blk)
    b_padded = n_bblk * b_blk
    tile_elems = tile_rows * _LANE

    # Lane-dense flattening.  Only pad when T*D is not a multiple of 128 (the
    # reshape requires it); tile-/batch-ragged edges are left to Pallas' ragged
    # edge blocks — no extra HBM read+write of the big inputs.
    pred_f = pred.reshape(B, F)
    true_f = true.reshape(B, F)
    if f_pad != F:
        pred_f = jnp.pad(pred_f, ((0, 0), (0, f_pad - F)))
        true_f = jnp.pad(true_f, ((0, 0), (0, f_pad - F)))
    pred_f = pred_f.reshape(B, rows, _LANE)
    true_f = true_f.reshape(B, rows, _LANE)

    # Only the tiny n_frames array is padded (to a whole number of batch blocks).
    nf_padded = jnp.pad(n_frames, (0, b_padded - B))
    nf_vmem = nf_padded.reshape(b_padded, 1, 1)

    # Per-batch-block tile bounds, scalar-prefetched to SMEM.
    nf_blocks = nf_padded.reshape(n_bblk, b_blk)
    max_nf = jnp.max(nf_blocks, axis=1)
    min_nf = jnp.min(nf_blocks, axis=1)
    last_tile = jnp.clip(
        (max_nf * D + tile_elems - 1) // tile_elems - 1, 0, n_tiles - 1
    ).astype(jnp.int32)
    full_tiles = jnp.minimum((min_nf * D) // tile_elems, n_tiles).astype(jnp.int32)

    kernel = functools.partial(_masked_frame_mse_kernel, feat_dim=D)

    def _data_map(i, j, last_ref, full_ref):
        # Clamp the frame-tile index to the last tile this batch block needs;
        # consecutive grid steps then map to the same block and the DMA is elided.
        return (i, jnp.minimum(j, last_ref[i]), 0)

    per_batch = pl.pallas_call(
        kernel,
        out_shape=jax.ShapeDtypeStruct((B, 1, 1), jnp.float32),
        grid_spec=pltpu.PrefetchScalarGridSpec(
            num_scalar_prefetch=2,
            grid=(n_bblk, n_tiles),
            in_specs=[
                pl.BlockSpec((b_blk, 1, 1), lambda i, j, lt, ft: (i, 0, 0)),
                pl.BlockSpec((b_blk, tile_rows, _LANE), _data_map),
                pl.BlockSpec((b_blk, tile_rows, _LANE), _data_map),
            ],
            out_specs=pl.BlockSpec((b_blk, 1, 1), lambda i, j, lt, ft: (i, 0, 0)),
            scratch_shapes=[pltpu.VMEM((b_blk, 1, _LANE), jnp.float32)],
        ),
        compiler_params=pltpu.CompilerParams(
            dimension_semantics=("parallel", "arbitrary"),
            vmem_limit_bytes=32 * 1024 * 1024,
        ),
    )(last_tile, full_tiles, nf_vmem, pred_f, true_f)

    # Mean over the batch (PyTorch: torch.mean(torch.stack(loss))).
    return jnp.mean(per_batch)


def _reference(pred, true, n_frames):
    """Plain-JAX reference matching the PyTorch semantics (MSE loss_fn)."""
    losses = []
    for i in range(pred.shape[0]):
        f = min(int(n_frames[i]), pred.shape[1])
        diff = pred[i, :f].astype(jnp.float32) - true[i, :f].astype(jnp.float32)
        losses.append(jnp.mean(diff * diff))
    return jnp.mean(jnp.stack(losses))


if __name__ == "__main__":
    key = jax.random.PRNGKey(0)
    k1, k2, k3, k4, k5, k6 = jax.random.split(key, 6)

    # Case 1: module-like small shapes (batch=2, frames=8, hidden=32), f32.
    B, T, D = 2, 8, 32
    pred = jax.random.normal(k1, (B, T, D), dtype=jnp.float32)
    true = jax.random.normal(k2, (B, T, D), dtype=jnp.float32)
    n_frames = jnp.array([5, 8], dtype=jnp.int32)
    out = masked_frame_loss(pred, true, n_frames)
    jax.block_until_ready(out)
    ref = _reference(pred, true, n_frames)
    assert jnp.allclose(out, ref, rtol=1e-5, atol=1e-5), (out, ref)

    # Case 2: tiny byte budget forces multi-tile reduction: exercises the
    # mask-free full tile, the masked boundary tile, skipping of tiles past
    # last_tile, and the ragged (unpadded) frame-tile tail.
    B2, T2, D2 = 2, 40, 48
    pred2 = jax.random.normal(k3, (B2, T2, D2), dtype=jnp.float32)
    true2 = jax.random.normal(k4, (B2, T2, D2), dtype=jnp.float32)
    n_frames2 = jnp.array([17, 40], dtype=jnp.int32)
    out2 = masked_frame_loss(pred2, true2, n_frames2, target_bytes=4096)
    jax.block_until_ready(out2)
    ref2 = _reference(pred2, true2, n_frames2)
    assert jnp.allclose(out2, ref2, rtol=1e-5, atol=1e-5), (out2, ref2)

    # Case 3: batch folding with a ragged last batch block (B=5, b_blk=3) and
    # T*D not a multiple of 128 (the only case where inputs get padded).
    B3, T3, D3 = 5, 8, 24
    pred3 = jax.random.normal(k5, (B3, T3, D3), dtype=jnp.float32)
    true3 = jax.random.normal(k6, (B3, T3, D3), dtype=jnp.float32)
    n_frames3 = jnp.array([5, 8, 3, 1, 8], dtype=jnp.int32)
    out3 = masked_frame_loss(pred3, true3, n_frames3)
    jax.block_until_ready(out3)
    ref3 = _reference(pred3, true3, n_frames3)
    assert jnp.allclose(out3, ref3, rtol=1e-5, atol=1e-5), (out3, ref3)

    # Case 4: bf16 inputs stay bf16 on the wire (half the HBM traffic); the
    # kernel casts to f32 internally, as does the reference.
    pred_bf16 = pred.astype(jnp.bfloat16)
    true_bf16 = true.astype(jnp.bfloat16)
    out4 = masked_frame_loss(pred_bf16, true_bf16, n_frames)
    jax.block_until_ready(out4)
    ref4 = _reference(pred_bf16, true_bf16, n_frames)
    assert jnp.allclose(out4, ref4, rtol=1e-3, atol=1e-3), (out4, ref4)

    print("KERNEL_OK")
</pallas_src>

<mosaic_0001>
module attributes {stable_mosaic.version = 11 : i64} {
  func.func @_masked_frame_mse_kernel(%arg0: i32, %arg1: i32, %arg2: memref<2xi32, #tpu.memory_space<smem>>, %arg3: memref<2xi32, #tpu.memory_space<smem>>, %arg4: memref<1x1x1xi32, #tpu.memory_space<vmem>>, %arg5: memref<1x2x128xf32, #tpu.memory_space<vmem>>, %arg6: memref<1x2x128xf32, #tpu.memory_space<vmem>>, %arg7: memref<1x1x1xf32, #tpu.memory_space<vmem>>, %arg8: memref<1x1x128xf32, #tpu.memory_space<vmem>>) attributes {dimension_semantics = [#tpu.dimension_semantics<parallel>, #tpu.dimension_semantics<arbitrary>], iteration_bounds = array<i64: 2, 1>, scalar_prefetch = 2 : i64, scratch_operands = 1 : i64, tpu.core_type = #tpu.core_type<tc>, window_params = [{transform_indices = @transform_0, window_bounds = array<i64: 1, 1, 1>}, {transform_indices = @transform_1, window_bounds = array<i64: 1, 2, 128>}, {transform_indices = @transform_2, window_bounds = array<i64: 1, 2, 128>}, {transform_indices = @transform_3, window_bounds = array<i64: 1, 1, 1>}]} {
    %c0_i32 = arith.constant 0 : i32
    %0 = arith.cmpi eq, %arg1, %c0_i32 : i32
    %1 = arith.extui %0 : i1 to i32
    %c0_i32_0 = arith.constant 0 : i32
    %2 = arith.cmpi ne, %1, %c0_i32_0 : i32
    scf.if %2 {
      %cst = arith.constant 0.000000e+00 : f32
      %18 = vector.broadcast %cst : f32 to vector<1x1x128xf32>
      %c0 = arith.constant 0 : index
      %c0_5 = arith.constant 0 : index
      %c0_6 = arith.constant 0 : index
      %19 = vector.load %arg8[%c0, %c0_5, %c0_6] : memref<1x1x128xf32, #tpu.memory_space<vmem>>, vector<1x1x128xf32>
      tpu.vector_store %arg8[%c0, %c0_5, %c0_6], %18 {strides = array<i32>} : memref<1x1x128xf32, #tpu.memory_space<vmem>>, vector<1x1x128xf32>,
    } else {
    }
    %3 = arith.index_cast %arg0 : i32 to index
    %4 = memref.load %arg2[%3] : memref<2xi32, #tpu.memory_space<smem>>
    %5 = arith.index_cast %arg0 : i32 to index
    %6 = memref.load %arg3[%5] : memref<2xi32, #tpu.memory_space<smem>>
    %7 = arith.cmpi slt, %arg1, %6 : i32
    %8 = arith.extui %7 : i1 to i32
    %c0_i32_1 = arith.constant 0 : i32
    %9 = arith.cmpi ne, %8, %c0_i32_1 : i32
    scf.if %9 {
      %c0 = arith.constant 0 : index
      %c0_5 = arith.constant 0 : index
      %c0_6 = arith.constant 0 : index
      %18 = vector.load %arg5[%c0, %c0_5, %c0_6] : memref<1x2x128xf32, #tpu.memory_space<vmem>>, vector<1x2x128xf32>
      %c0_7 = arith.constant 0 : index
      %c0_8 = arith.constant 0 : index
      %c0_9 = arith.constant 0 : index
      %19 = vector.load %arg6[%c0_7, %c0_8, %c0_9] : memref<1x2x128xf32, #tpu.memory_space<vmem>>, vector<1x2x128xf32>
      %20 = arith.subf %18, %19 : vector<1x2x128xf32>
      %c0_10 = arith.constant 0 : index
      %c0_11 = arith.constant 0 : index
      %c0_12 = arith.constant 0 : index
      %21 = vector.load %arg8[%c0_10, %c0_11, %c0_12] : memref<1x1x128xf32, #tpu.memory_space<vmem>>, vector<1x1x128xf32>
      %22 = arith.mulf %20, %20 : vector<1x2x128xf32>
      %cst = arith.constant dense<0.000000e+00> : vector<1x128xf32>
      %23 = vector.multi_reduction <add>, %22, %cst [1] : vector<1x2x128xf32> to vector<1x128xf32>
      %24 = vector.shape_cast %23 : vector<1x128xf32> to vector<1x1x128xf32>
      %25 = arith.addf %21, %24 : vector<1x1x128xf32>
      %c0_13 = arith.constant 0 : index
      %c0_14 = arith.constant 0 : index
      %c0_15 = arith.constant 0 : index
      %26 = vector.load %arg8[%c0_13, %c0_14, %c0_15] : memref<1x1x128xf32, #tpu.memory_space<vmem>>, vector<1x1x128xf32>
      tpu.vector_store %arg8[%c0_13, %c0_14, %c0_15], %25 {strides = array<i32>} : memref<1x1x128xf32, #tpu.memory_space<vmem>>, vector<1x1x128xf32>,
    } else {
    }
    %10 = arith.cmpi sge, %arg1, %6 : i32
    %11 = arith.cmpi sle, %arg1, %4 : i32
    %12 = arith.andi %10, %11 : i1
    %13 = arith.extui %12 : i1 to i32
    %c0_i32_2 = arith.constant 0 : i32
    %14 = arith.cmpi ne, %13, %c0_i32_2 : i32
    scf.if %14 {
      %c0 = arith.constant 0 : index
      %c0_5 = arith.constant 0 : index
      %c0_6 = arith.constant 0 : index
      %18 = vector.load %arg5[%c0, %c0_5, %c0_6] : memref<1x2x128xf32, #tpu.memory_space<vmem>>, vector<1x2x128xf32>
      %c0_7 = arith.constant 0 : index
      %c0_8 = arith.constant 0 : index
      %c0_9 = arith.constant 0 : index
      %19 = vector.load %arg6[%c0_7, %c0_8, %c0_9] : memref<1x2x128xf32, #tpu.memory_space<vmem>>, vector<1x2x128xf32>
      %20 = arith.subf %18, %19 : vector<1x2x128xf32>
      %c0_10 = arith.constant 0 : index
      %c0_11 = arith.constant 0 : index
      %c0_12 = arith.constant 0 : index
      %21 = vector.load %arg4[%c0_10, %c0_11, %c0_12] : memref<1x1x1xi32, #tpu.memory_space<vmem>>, vector<1x1x1xi32>
      %c32_i32 = arith.constant 32 : i32
      %22 = vector.broadcast %c32_i32 : i32 to vector<1x1x1xi32>
      %23 = arith.muli %21, %22 : vector<1x1x1xi32>
      %24 = tpu.iota {dimensions = array<i32: 1>} : vector<1x2x1xi32>
      %c2_i32 = arith.constant 2 : i32
      %25 = arith.muli %arg1, %c2_i32 : i32
      %26 = vector.broadcast %25 : i32 to vector<1x2x1xi32>
      %27 = arith.addi %24, %26 : vector<1x2x1xi32>
      %c128_i32 = arith.constant 128 : i32
      %28 = vector.broadcast %c128_i32 : i32 to vector<1x2x1xi32>
      %29 = arith.muli %27, %28 : vector<1x2x1xi32>
      %30 = tpu.iota {dimensions = array<i32: 2>} : vector<1x1x128xi32>
      %31 = vector.broadcast %23 : vector<1x1x1xi32> to vector<1x2x1xi32>
      %32 = arith.subi %31, %29 : vector<1x2x1xi32>
      %33 = vector.broadcast %30 : vector<1x1x128xi32> to vector<1x2x128xi32>
      %34 = vector.broadcast %32 : vector<1x2x1xi32> to vector<1x2x128xi32>
      %35 = arith.cmpi slt, %33, %34 : vector<1x2x128xi32>
      %cst = arith.constant 0.000000e+00 : f32
      %36 = vector.broadcast %cst : f32 to vector<1x2x128xf32>
      %37 = arith.select %35, %20, %36 : vector<1x2x128xi1>, vector<1x2x128xf32>
      %c0_13 = arith.constant 0 : index
      %c0_14 = arith.constant 0 : index
      %c0_15 = arith.constant 0 : index
      %38 = vector.load %arg8[%c0_13, %c0_14, %c0_15] : memref<1x1x128xf32, #tpu.memory_space<vmem>>, vector<1x1x128xf32>
      %39 = arith.mulf %37, %37 : vector<1x2x128xf32>
      %cst_16 = arith.constant dense<0.000000e+00> : vector<1x128xf32>
      %40 = vector.multi_reduction <add>, %39, %cst_16 [1] : vector<1x2x128xf32> to vector<1x128xf32>
      %41 = vector.shape_cast %40 : vector<1x128xf32> to vector<1x1x128xf32>
      %42 = arith.addf %38, %41 : vector<1x1x128xf32>
      %c0_17 = arith.constant 0 : index
      %c0_18 = arith.constant 0 : index
      %c0_19 = arith.constant 0 : index
      %43 = vector.load %arg8[%c0_17, %c0_18, %c0_19] : memref<1x1x128xf32, #tpu.memory_space<vmem>>, vector<1x1x128xf32>
      tpu.vector_store %arg8[%c0_17, %c0_18, %c0_19], %42 {strides = array<i32>} : memref<1x1x128xf32, #tpu.memory_space<vmem>>, vector<1x1x128xf32>,
    } else {
    }
    %c0_i32_3 = arith.constant 0 : i32
    %15 = arith.cmpi eq, %arg1, %c0_i32_3 : i32
    %16 = arith.extui %15 : i1 to i32
    %c0_i32_4 = arith.constant 0 : i32
    %17 = arith.cmpi ne, %16, %c0_i32_4 : i32
    scf.if %17 {
      %c0 = arith.constant 0 : index
      %c0_5 = arith.constant 0 : index
      %c0_6 = arith.constant 0 : index
      %18 = vector.load %arg4[%c0, %c0_5, %c0_6] : memref<1x1x1xi32, #tpu.memory_space<vmem>>, vector<1x1x1xi32>
      %c32_i32 = arith.constant 32 : i32
      %19 = vector.broadcast %c32_i32 : i32 to vector<1x1x1xi32>
      %20 = arith.muli %18, %19 : vector<1x1x1xi32>
      %21 = arith.sitofp %20 : vector<1x1x1xi32> to vector<1x1x1xf32>
      %c0_7 = arith.constant 0 : index
      %c0_8 = arith.constant 0 : index
      %c0_9 = arith.constant 0 : index
      %22 = vector.load %arg8[%c0_7, %c0_8, %c0_9] : memref<1x1x128xf32, #tpu.memory_space<vmem>>, vector<1x1x128xf32>
      %cst = arith.constant dense<0.000000e+00> : vector<1x1xf32>
      %23 = vector.multi_reduction <add>, %22, %cst [2] : vector<1x1x128xf32> to vector<1x1xf32>
      %24 = vector.shape_cast %23 : vector<1x1xf32> to vector<1x1x1xf32>
      %25 = arith.divf %24, %21 : vector<1x1x1xf32>
      %c0_10 = arith.constant 0 : index
      %c0_11 = arith.constant 0 : index
      %c0_12 = arith.constant 0 : index
      %26 = vector.load %arg7[%c0_10, %c0_11, %c0_12] : memref<1x1x1xf32, #tpu.memory_space<vmem>>, vector<1x1x1xf32>
      tpu.vector_store %arg7[%c0_10, %c0_11, %c0_12], %25 {strides = array<i32>} : memref<1x1x1xf32, #tpu.memory_space<vmem>>, vector<1x1x1xf32>,
    } else {
    }
    return
  }
  func.func @transform_0(%arg0: i32, %arg1: i32, %arg2: memref<2xi32, #tpu.memory_space<smem>>, %arg3: memref<2xi32, #tpu.memory_space<smem>>) -> (i32, i32, i32) {
    %c0_i32 = arith.constant 0 : i32
    %c0_i32_0 = arith.constant 0 : i32
    %c0_i32_1 = arith.constant 0 : i32
    return %arg0, %c0_i32, %c0_i32_0 : i32, i32, i32
  }
  func.func @transform_1(%arg0: i32, %arg1: i32, %arg2: memref<2xi32, #tpu.memory_space<smem>>, %arg3: memref<2xi32, #tpu.memory_space<smem>>) -> (i32, i32, i32) {
    %0 = arith.index_cast %arg0 : i32 to index
    %1 = memref.load %arg2[%0] : memref<2xi32, #tpu.memory_space<smem>>
    %2 = arith.minsi %arg1, %1 : i32
    %c0_i32 = arith.constant 0 : i32
    %c0_i32_0 = arith.constant 0 : i32
    return %arg0, %2, %c0_i32 : i32, i32, i32
  }
  func.func @transform_2(%arg0: i32, %arg1: i32, %arg2: memref<2xi32, #tpu.memory_space<smem>>, %arg3: memref<2xi32, #tpu.memory_space<smem>>) -> (i32, i32, i32) {
    %0 = arith.index_cast %arg0 : i32 to index
    %1 = memref.load %arg2[%0] : memref<2xi32, #tpu.memory_space<smem>>
    %2 = arith.minsi %arg1, %1 : i32
    %c0_i32 = arith.constant 0 : i32
    %c0_i32_0 = arith.constant 0 : i32
    return %arg0, %2, %c0_i32 : i32, i32, i32
  }
  func.func @transform_3(%arg0: i32, %arg1: i32, %arg2: memref<2xi32, #tpu.memory_space<smem>>, %arg3: memref<2xi32, #tpu.memory_space<smem>>) -> (i32, i32, i32) {
    %c0_i32 = arith.constant 0 : i32
    %c0_i32_0 = arith.constant 0 : i32
    %c0_i32_1 = arith.constant 0 : i32
    return %arg0, %c0_i32, %c0_i32_0 : i32, i32, i32
  }
}

</mosaic_0001>

<llo_original>
// kernel: tpu_custom_call.1
$region0: #{tpu_custom_call.1}
  #allocation0 [shape = 'u32[]', space=smem, size = 0x4, offset = 0x4, fixed_abs, tag = 'smem constant byte address 0x4 - core index']
  #allocation1 [shape = 'u32[144,128]{1,0:T(1,128)}', space=vmem, size = 0x12000, scoped, tag = 'internal scratch']
  #allocation2 [shape = 'f32[1,1,128]{2,1,0:T(1,128)}', space=vmem, size = 0x200, scoped, tag = 'scratch operand']
  #allocation3 [shape = 's32[1]{0}', space=sflag, size = 0x4, scoped, tag = 'scoped memory for tpu_custom_call.1']
  #allocation4 [shape = 'u8[512]{0}', space=smem, size = 0x200, scoped, tag = 'prefetched SMEM operand 0']
  #allocation5 [shape = 'u8[512]{0}', space=smem, size = 0x200, scoped, tag = 'prefetched SMEM operand 1']
  %s0 = inlined_call_operand.vmem [shape: s32[2], index: 0, kind: input, shape index: {}]
  %s1 = inlined_call_operand.vmem [shape: s32[2], index: 1, kind: input, shape index: {}]
  %s2 = inlined_call_operand.vmem [shape: s32[2,1,1], index: 2, kind: input, shape index: {}]
  %s3 = inlined_call_operand.vmem [shape: f32[2,2,128], index: 3, kind: input, shape index: {}]
  %s4 = inlined_call_operand.vmem [shape: f32[2,2,128], index: 4, kind: input, shape index: {}]
  %s5 = inlined_call_operand.vmem [shape: f32[2,1,1], index: 5, kind: output, shape index: {}]
  %s6 = sld [smem:[#allocation0]]
  $region61: #{tpu_custom_call.1} parent=0
    _
  %s8 = ssub.s32 1, %s6
  %s9 = scalar_select 0, %s8, %s6
  %s10 = sshll.u32 %s0, 4
  %s11 = int_to_ptr.vmem [resolvable:$true] %s10
  %13 = dma.vmem_to_smem %s11, 16, [#allocation4], [#allocation3]
  %s14 = sshll.u32 %s1, 4
  %s15 = int_to_ptr.vmem [resolvable:$true] %s14
  %17 = dma.vmem_to_smem %s15, 16, [#allocation5], [#allocation3]
  %18 = dma.done [#allocation3], 32
  %19 = sfence
  loop: start=0, step=1, limit=4
  $region2: #{tpu_custom_call.1} parent=0 // loop_pre_header
    _
  $region3: #{tpu_custom_call.1} parent=0 // loop_header
    %s21 = sphi 0, %s25
    %p22 = scmp.ge.s32.totalorder %s21, 4
    %s28 = sphi 0, %s40
    %s29 = sphi 0, %s36
    %s30 = sphi 0, %s28
    %s31 = sphi 0, %s29
    %s32 = sphi 0, %s30
    %s33 = sphi 0, %s31
    %s43 = sphi 0, %s45
    %s46 = sphi 0, %s43
    %s47 = sphi 0, %s46
    %s63 = sphi 0, %s47
    %s77 = sphi 0, %s79
    %s80 = sphi 0, %s77
    %s81 = sphi 0, %s80
    %s97 = sphi 0, %s81
    %s111 = sphi 0, %s113
    %s114 = sphi 0, %s111
    %s115 = sphi 0, %s114
    %s131 = sphi 0, %s115
    %s137 = sphi 0, %s139
    %s140 = sphi 0, %s137
    %s141 = sphi 0, %s140
    %s157 = sphi 0, %s141
  $region4: #{tpu_custom_call.1} parent=0 // loop_header_branch
    %24 = sbr.rel (%p22) target = $region8
  $region5: #{tpu_custom_call.1} parent=0 // loop_body
    %s26 = ssub.s32 %s21, 1
    %s27 = ssub.s32 %s21, 2
    %s34 = sadd.s32 1, %s29
    %p35 = scmp.ge.s32.totalorder %s34, 1
    %s36 = scalar_select %p35, 0, %s34
    %s37 = sadd.s32 1, %s28
    %s38 = scalar_select %p35, %s37, %s28
    %p39 = scmp.ge.s32.totalorder %s38, 2
    %s40 = scalar_select %p39, 0, %s38
    %s41 = ssub.s32 %s28, %s40
    %p42 = scmp.eq.s32.totalorder %s41, 0
    %s44 = sadd.s32 %s43, 1
    %s45 = scalar_select %p42, %s43, %s44
    %p48 = pneg %p42
    %p49 = scmp.eq.s32.totalorder %s21, 1
    %p50 = por %p48, %p49
    %p51 = scmp.ne.s32.totalorder %s43, %s46
    %p52 = scmp.eq.s32.totalorder %s21, 0
    %p53 = por %p51, %p52
    %p54 = scmp.ne.s32.totalorder %s43, %s46
    %p55 = scmp.eq.s32.totalorder %s26, 1
    %p56 = por %p54, %p55
    %p57 = scmp.ne.s32.totalorder %s46, %s47
    %p58 = scmp.eq.s32.totalorder %s26, 0
    %p59 = por %p57, %p58
    %p60 = scmp.ne.s32.totalorder %s46, %s47
    %p61 = scmp.eq.s32.totalorder %s27, 1
    %p62 = por %p60, %p61
    %p64 = scmp.ne.s32.totalorder %s47, %s63
    %p65 = scmp.eq.s32.totalorder %s27, 0
    %p66 = por %p64, %p65
    %s67 = sld [smem:[#allocation4 + %s28]]
    %p68 = scmp.lt.s32.totalorder %s29, %s67
    %s69 = scalar_select %p68, %s29, %s67
    %s70 = sld [smem:[#allocation4 + %s40]]
    %p71 = scmp.lt.s32.totalorder %s36, %s70
    %s72 = scalar_select %p71, %s36, %s70
    %s73 = ssub.s32 %s28, %s40
    %s74 = ssub.s32 %s69, %s72
    %s75 = sor.u32 %s73, %s74
    %p76 = scmp.eq.s32.totalorder %s75, 0
    %s78 = sadd.s32 %s77, 1
    %s79 = scalar_select %p76, %s77, %s78
    %p82 = pneg %p76
    %p83 = scmp.eq.s32.totalorder %s21, 1
    %p84 = por %p82, %p83
    %p85 = scmp.ne.s32.totalorder %s77, %s80
    %p86 = scmp.eq.s32.totalorder %s21, 0
    %p87 = por %p85, %p86
    %p88 = scmp.ne.s32.totalorder %s77, %s80
    %p89 = scmp.eq.s32.totalorder %s26, 1
    %p90 = por %p88, %p89
    %p91 = scmp.ne.s32.totalorder %s80, %s81
    %p92 = scmp.eq.s32.totalorder %s26, 0
    %p93 = por %p91, %p92
    %p94 = scmp.ne.s32.totalorder %s80, %s81
    %p95 = scmp.eq.s32.totalorder %s27, 1
    %p96 = por %p94, %p95
    %p98 = scmp.ne.s32.totalorder %s81, %s97
    %p99 = scmp.eq.s32.totalorder %s27, 0
    %p100 = por %p98, %p99
    %s101 = sld [smem:[#allocation4 + %s28]]
    %p102 = scmp.lt.s32.totalorder %s29, %s101
    %s103 = scalar_select %p102, %s29, %s101
    %s104 = sld [smem:[#allocation4 + %s40]]
    %p105 = scmp.lt.s32.totalorder %s36, %s104
    %s106 = scalar_select %p105, %s36, %s104
    %s107 = ssub.s32 %s28, %s40
    %s108 = ssub.s32 %s103, %s106
    %s109 = sor.u32 %s107, %s108
    %p110 = scmp.eq.s32.totalorder %s109, 0
    %s112 = sadd.s32 %s111, 1
    %s113 = scalar_select %p110, %s111, %s112
    %p116 = pneg %p110
    %p117 = scmp.eq.s32.totalorder %s21, 1
    %p118 = por %p116, %p117
    %p119 = scmp.ne.s32.totalorder %s111, %s114
    %p120 = scmp.eq.s32.totalorder %s21, 0
    %p121 = por %p119, %p120
    %p122 = scmp.ne.s32.totalorder %s111, %s114
    %p123 = scmp.eq.s32.totalorder %s26, 1
    %p124 = por %p122, %p123
    %p125 = scmp.ne.s32.totalorder %s114, %s115
    %p126 = scmp.eq.s32.totalorder %s26, 0
    %p127 = por %p125, %p126
    %p128 = scmp.ne.s32.totalorder %s114, %s115
    %p129 = scmp.eq.s32.totalorder %s27, 1
    %p130 = por %p128, %p129
    %p132 = scmp.ne.s32.totalorder %s115, %s131
    %p133 = scmp.eq.s32.totalorder %s27, 0
    %p134 = por %p132, %p133
    %s135 = ssub.s32 %s28, %s40
    %p136 = scmp.eq.s32.totalorder %s135, 0
    %s138 = sadd.s32 %s137, 1
    %s139 = scalar_select %p136, %s137, %s138
    %p142 = pneg %p136
    %p143 = scmp.eq.s32.totalorder %s21, 1
    %p144 = por %p142, %p143
    %p145 = scmp.ne.s32.totalorder %s137, %s140
    %p146 = scmp.eq.s32.totalorder %s21, 0
    %p147 = por %p145, %p146
    %p148 = scmp.ne.s32.totalorder %s137, %s140
    %p149 = scmp.eq.s32.totalorder %s26, 1
    %p150 = por %p148, %p149
    %p151 = scmp.ne.s32.totalorder %s140, %s141
    %p152 = scmp.eq.s32.totalorder %s26, 0
    %p153 = por %p151, %p152
    %p154 = scmp.ne.s32.totalorder %s140, %s141
    %p155 = scmp.eq.s32.totalorder %s27, 1
    %p156 = por %p154, %p155
    %p158 = scmp.ne.s32.totalorder %s141, %s157
    %p159 = scmp.eq.s32.totalorder %s27, 0
    %p160 = por %p158, %p159
    %p161 = scmp.le.s32.totalorder 1, %s21
    %p162 = scmp.lt.s32.totalorder %s21, 3
    %p163 = pnand %p161, %p162
    %p164 = pneg %p163
    // Predicated region
    $region9: #{tpu_custom_call.1} parent=5 // pred_check
      _
    $region10: #{tpu_custom_call.1} parent=5 // pred_check_branch
      %166 = sbr.rel (%p163) target = $region12
    $region11: #{tpu_custom_call.1} parent=5 // pred_region
      %s167 = ssub.s32 %s21, 1
    $region12: #{tpu_custom_call.1} parent=5 // pred_fallthru
      _
    %p168 = scmp.lt.s32.totalorder %s21, 2
    // Predicated region
    $region13: #{tpu_custom_call.1} parent=5 // pred_check
      %p169 = pneg %p168
    $region14: #{tpu_custom_call.1} parent=5 // pred_check_branch
      %171 = sbr.rel (%p169) target = $region16
    $region15: #{tpu_custom_call.1} parent=5 // pred_region
      // Predicated region
      $region17: #{tpu_custom_call.1} parent=15 // pred_check
        %p172 = pneg %p53
      $region18: #{tpu_custom_call.1} parent=15 // pred_check_branch
        %174 = sbr.rel (%p172) target = $region20
      $region19: #{tpu_custom_call.1} parent=15 // pred_region
        %p175 = scmp.lt.s32.totalorder %s28, 1
        %s176 = scalar_select %p175, %s28, 1
        %s177 = scalar_lea.vmem %s2, %s176
      $region20: #{tpu_custom_call.1} parent=15 // pred_fallthru
        _
      // Predicated region
      $region21: #{tpu_custom_call.1} parent=15 // pred_check
        %p178 = pneg %p87
      $region22: #{tpu_custom_call.1} parent=15 // pred_check_branch
        %180 = sbr.rel (%p178) target = $region24
      $region23: #{tpu_custom_call.1} parent=15 // pred_region
        %s181 = sld [smem:[#allocation4 + %s28]]
        %p182 = scmp.lt.s32.totalorder %s29, %s181
        %s183 = scalar_select %p182, %s29, %s181
        %p184 = scmp.lt.s32.totalorder %s28, 1
        %s185 = scalar_select %p184, %s28, 1
        %p186 = scmp.lt.s32.totalorder %s183, 0
        %s187 = scalar_select %p186, %s183, 0
        %s188 = sadd.s32 %s187, %s185
        %s189 = smul.addr %s188, 2
        %s190 = scalar_lea.vmem %s3, %s189
        %s191 = sld [smem:[#allocation4 + %s28]]
        %p192 = scmp.lt.s32.totalorder %s29, %s191
        %s193 = scalar_select %p192, %s29, %s191
      $region24: #{tpu_custom_call.1} parent=15 // pred_fallthru
        _
      // Predicated region
      $region25: #{tpu_custom_call.1} parent=15 // pred_check
        %p194 = pneg %p121
      $region26: #{tpu_custom_call.1} parent=15 // pred_check_branch
        %196 = sbr.rel (%p194) target = $region28
      $region27: #{tpu_custom_call.1} parent=15 // pred_region
        %s197 = sld [smem:[#allocation4 + %s28]]
        %p198 = scmp.lt.s32.totalorder %s29, %s197
        %s199 = scalar_select %p198, %s29, %s197
        %p200 = scmp.lt.s32.totalorder %s28, 1
        %s201 = scalar_select %p200, %s28, 1
        %p202 = scmp.lt.s32.totalorder %s199, 0
        %s203 = scalar_select %p202, %s199, 0
        %s204 = sadd.s32 %s203, %s201
        %s205 = smul.addr %s204, 2
        %s206 = scalar_lea.vmem %s4, %s205
        %s207 = sld [smem:[#allocation4 + %s28]]
        %p208 = scmp.lt.s32.totalorder %s29, %s207
        %s209 = scalar_select %p208, %s29, %s207
      $region28: #{tpu_custom_call.1} parent=15 // pred_fallthru
        _
    $region16: #{tpu_custom_call.1} parent=5 // pred_fallthru
      _
    %p210 = scmp.le.s32.totalorder 1, %s21
    %p211 = scmp.lt.s32.totalorder %s21, 3
    %p212 = pnand %p210, %p211
    %p213 = pneg %p212
    // Predicated region
    $region29: #{tpu_custom_call.1} parent=5 // pred_check
      _
    $region30: #{tpu_custom_call.1} parent=5 // pred_check_branch
      %215 = sbr.rel (%p212) target = $region32
    $region31: #{tpu_custom_call.1} parent=5 // pred_region
      %s216 = ssub.s32 %s21, 1
      %p217 = scmp.lt.s32.totalorder %s30, 1
      %s218 = scalar_select %p217, %s30, 1
      %s219 = scalar_lea.vmem %s2, %s218
      %p220 = pneg %p59
      %p221 = pneg %p56
      %s222 = sld [smem:[#allocation4 + %s30]]
      %p223 = scmp.lt.s32.totalorder %s31, %s222
      %s224 = scalar_select %p223, %s31, %s222
      %p225 = scmp.lt.s32.totalorder %s30, 1
      %s226 = scalar_select %p225, %s30, 1
      %p227 = scmp.lt.s32.totalorder %s224, 0
      %s228 = scalar_select %p227, %s224, 0
      %s229 = sadd.s32 %s228, %s226
      %s230 = smul.addr %s229, 2
      %s231 = scalar_lea.vmem %s3, %s230
      %p232 = pneg %p93
      %p233 = pneg %p90
      %s234 = sld [smem:[#allocation4 + %s30]]
      %p235 = scmp.lt.s32.totalorder %s31, %s234
      %s236 = scalar_select %p235, %s31, %s234
      %p237 = scmp.lt.s32.totalorder %s30, 1
      %s238 = scalar_select %p237, %s30, 1
      %p239 = scmp.lt.s32.totalorder %s236, 0
      %s240 = scalar_select %p239, %s236, 0
      %s241 = sadd.s32 %s240, %s238
      %s242 = smul.addr %s241, 2
      %s243 = scalar_lea.vmem %s4, %s242
      %p244 = pneg %p127
      %p245 = pneg %p124
      %p246 = pneg %p153
      %p247 = pneg %p150
      %p248 = scmp.lt.s32.totalorder %s30, 1
      %s249 = scalar_select %p248, %s30, 1
      %s250 = scalar_lea.vmem %s5, %s249
      %p251 = scmp.lt.s32.totalorder %s30, 1
      %s252 = scalar_select %p251, %s30, 1
      %s253 = scalar_lea.vmem %s2, %s252
      %s254 = sld [smem:[#allocation4 + %s30]]
      %p255 = scmp.lt.s32.totalorder %s31, %s254
      %s256 = scalar_select %p255, %s31, %s254
      %p257 = scmp.lt.s32.totalorder %s30, 1
      %s258 = scalar_select %p257, %s30, 1
      %p259 = scmp.lt.s32.totalorder %s256, 0
      %s260 = scalar_select %p259, %s256, 0
      %s261 = sadd.s32 %s260, %s258
      %s262 = smul.addr %s261, 2
      %s263 = scalar_lea.vmem %s3, %s262
      %s264 = sld [smem:[#allocation4 + %s30]]
      %p265 = scmp.lt.s32.totalorder %s31, %s264
      %s266 = scalar_select %p265, %s31, %s264
      %s267 = sld [smem:[#allocation4 + %s30]]
      %p268 = scmp.lt.s32.totalorder %s31, %s267
      %s269 = scalar_select %p268, %s31, %s267
      %p270 = scmp.lt.s32.totalorder %s30, 1
      %s271 = scalar_select %p270, %s30, 1
      %p272 = scmp.lt.s32.totalorder %s269, 0
      %s273 = scalar_select %p272, %s269, 0
      %s274 = sadd.s32 %s273, %s271
      %s275 = smul.addr %s274, 2
      %s276 = scalar_lea.vmem %s4, %s275
      %s277 = sld [smem:[#allocation4 + %s30]]
      %p278 = scmp.lt.s32.totalorder %s31, %s277
      %s279 = scalar_select %p278, %s31, %s277
      %p280 = scmp.lt.s32.totalorder %s30, 1
      %s281 = scalar_select %p280, %s30, 1
      %s282 = scalar_lea.vmem %s5, %s281
      %p283 = scmp.eq.s32.totalorder %s31, 0
      // Predicated region
      $region33: #{tpu_custom_call.1} parent=31 // pred_check
        %p284 = pneg %p283
      $region34: #{tpu_custom_call.1} parent=31 // pred_check_branch
        %286 = sbr.rel (%p284) target = $region36
      $region35: #{tpu_custom_call.1} parent=31 // pred_region
        %287 = vst [vmem:[#allocation2] sm:$0x1] 0.0
      $region36: #{tpu_custom_call.1} parent=31 // pred_fallthru
        _
      %s288 = sld [smem:[#allocation4 + %s30]]
      %s289 = sld [smem:[#allocation5 + %s30]]
      %p290 = scmp.lt.s32.totalorder %s31, %s289
      // Predicated region
      $region37: #{tpu_custom_call.1} parent=31 // pred_check
        %p291 = pneg %p290
      $region38: #{tpu_custom_call.1} parent=31 // pred_check_branch
        %293 = sbr.rel (%p291) target = $region40
      $region39: #{tpu_custom_call.1} parent=31 // pred_region
        %v294 = vld [vmem:[%s263] sm:$0x3]
        %v295 = vld [vmem:[%s276] sm:$0x3]
        %v296 = vsub.f32 %v294, %v295
        %v297 = vld [vmem:[#allocation2] sm:$0x1]
        %v298 = vmul.f32 %v296, %v296
        %vm299 = vcmask 1041408
        %v300 = vsel %vm299, %v298, 0.0
        %v301 = vrot.slane %v300, 4
        %v302 = vadd.f32 %v300, %v301
        %v303 = vrot.slane %v302, 2
        %v304 = vadd.f32 %v302, %v303
        %v305 = vrot.slane %v304, 1
        %v306 = vadd.f32 %v304, %v305
        %v307 = vadd.f32 %v297, %v306
        %308 = vst [vmem:[#allocation2] sm:$0x1] %v307
      $region40: #{tpu_custom_call.1} parent=31 // pred_fallthru
        _
      %p309 = scmp.ge.s32.totalorder %s31, %s289
      %p310 = scmp.le.s32.totalorder %s31, %s288
      %p311 = pnand %p309, %p310
      %p312 = pneg %p311
      // Predicated region
      $region41: #{tpu_custom_call.1} parent=31 // pred_check
        _
      $region42: #{tpu_custom_call.1} parent=31 // pred_check_branch
        %314 = sbr.rel (%p311) target = $region44
      $region43: #{tpu_custom_call.1} parent=31 // pred_region
        %v315 = vld [vmem:[%s263] sm:$0x3]
        %v316 = vld [vmem:[%s276] sm:$0x3]
        %v317 = vsub.f32 %v315, %v316
        %v318 = vld [vmem:[%s253] sm:$0x1]
        %v319 = vmul.u32 %v318, 32
        %v320 = vlaneseq
        %v321 = vshrl.u32 %v320, 7
        %s322 = smul.u32 %s31, 2
        %v323 = vstv %s322
        %v324 = vadd.s32 %v321, %v323
        %v325 = vmul.u32 %v324, 128
        %v326 = vlaneseq
        %v327 = vand.u32 %v326, 127
        %v328 = vlaneseq
        %v329 = vshrl.u32 %v328, 7
        %v330 = vsub.s32 0, %v329
        %v331 = vrot.slane %v319, %v330
        %v332 = vsub.s32 %v331, %v325
        %333 = vset.pattern.permute.xlu0 0
        %334 = vperm.xlu0 %333, %v332
        %v335 = vpop.permute.xlu0 %334
        %vm336 = vcmp.lt.s32.totalorder %v327, %v335
        %v337 = vsel %vm336, %v317, 0.0
        %v338 = vld [vmem:[#allocation2] sm:$0x1]
        %v339 = vmul.f32 %v337, %v337
        %vm340 = vcmask 1041408
        %v341 = vsel %vm340, %v339, 0.0
        %v342 = vrot.slane %v341, 4
        %v343 = vadd.f32 %v341, %v342
        %v344 = vrot.slane %v343, 2
        %v345 = vadd.f32 %v343, %v344
        %v346 = vrot.slane %v345, 1
        %v347 = vadd.f32 %v345, %v346
        %v348 = vadd.f32 %v338, %v347
        %349 = vst [vmem:[#allocation2] sm:$0x1] %v348
      $region44: #{tpu_custom_call.1} parent=31 // pred_fallthru
        _
      // Predicated region
      $region45: #{tpu_custom_call.1} parent=31 // pred_check
        %p350 = pneg %p283
      $region46: #{tpu_custom_call.1} parent=31 // pred_check_branch
        %352 = sbr.rel (%p350) target = $region48
      $region47: #{tpu_custom_call.1} parent=31 // pred_region
        %v353 = vld [vmem:[%s253] sm:$0x1]
        %v354 = vmul.u32 %v353, 32
        %v355 = vcvt.s32.f32 %v354
        %v356 = vld [vmem:[#allocation2] sm:$0x1]
        %vm357 = vcmask 1040384
        %v358 = vsel %vm357, %v356, 0.0
        %359 = vadd.xlane.f32.xlu0 %v358
        %v360 = vpop.xlane.xlu0 %359
        %v361 = vrcp.pop %v355
        %v362 = vmul.f32 %v360, %v361
        %vm363 = vcmask 0
        %364 = vst.msk [vmem:[%s282] sm:$0x1] %vm363, %v362
      $region48: #{tpu_custom_call.1} parent=31 // pred_fallthru
        _
      %p365 = scmp.lt.s32.totalorder %s30, 1
      %s366 = scalar_select %p365, %s30, 1
      %s367 = scalar_lea.vmem %s5, %s366
      // Predicated region
      $region49: #{tpu_custom_call.1} parent=31 // pred_check
        %p368 = pneg %p150
      $region50: #{tpu_custom_call.1} parent=31 // pred_check_branch
        %370 = sbr.rel (%p368) target = $region52
      $region51: #{tpu_custom_call.1} parent=31 // pred_region
        _
      $region52: #{tpu_custom_call.1} parent=31 // pred_fallthru
        _
    $region32: #{tpu_custom_call.1} parent=5 // pred_fallthru
      _
    %p371 = scmp.le.s32.totalorder 2, %s21
    // Predicated region
    $region53: #{tpu_custom_call.1} parent=5 // pred_check
      %p372 = pneg %p371
    $region54: #{tpu_custom_call.1} parent=5 // pred_check_branch
      %374 = sbr.rel (%p372) target = $region56
    $region55: #{tpu_custom_call.1} parent=5 // pred_region
      %s375 = ssub.s32 %s21, 2
      // Predicated region
      $region57: #{tpu_custom_call.1} parent=55 // pred_check
        %p376 = pneg %p156
      $region58: #{tpu_custom_call.1} parent=55 // pred_check_branch
        %378 = sbr.rel (%p376) target = $region60
      $region59: #{tpu_custom_call.1} parent=55 // pred_region
        %p379 = scmp.lt.s32.totalorder %s32, 1
        %s380 = scalar_select %p379, %s32, 1
        %s381 = scalar_lea.vmem %s5, %s380
      $region60: #{tpu_custom_call.1} parent=55 // pred_fallthru
        _
    $region56: #{tpu_custom_call.1} parent=5 // pred_fallthru
      _
  $region6: #{tpu_custom_call.1} parent=0 // loop_footer
    %s25 = sadd.s32 1, %s21
  $region7: #{tpu_custom_call.1} parent=0 // loop_footer_branch
    %20 = sbr.rel target = $region3
  $region8: #{tpu_custom_call.1} parent=0 // loop_exit
    _

</llo_original>
